<compile_context>
chip_gen: v5e
topology: v5e:2x2
jax: 0.10.0
libtpu: 0.0.40
codegen_flags: <defaults>
</compile_context>

<pallas_src>
import functools

import jax
import jax.numpy as jnp
from jax.experimental import pallas as pl
from jax.experimental.pallas import tpu as pltpu

Categories = ['Alopodmo', 'Ankush', 'Ardhachandra', 'Bhramar', 'Chatur',
              'Ghronik', 'Hongshashyo', 'Kangul', 'Kodombo', 'Kopitho',
              'Krishnaxarmukh', 'Mrigoshirsho', 'Mukul', 'Unknown']
NUM_CLASSES = len(Categories)  # 14

_LANE = 128


def _round_up(x, m):
    return ((x + m - 1) // m) * m


def choose_k_tile(k, batch_size):
    """Largest K tile (multiple of 128 lanes) sized for the batch regime."""
    max_tk = 8192 if batch_size <= 256 else 4096
    return min(max_tk, _round_up(k, _LANE))


def prepare_linear_params(weight, bias, *, tk):
    """One-time parameter prep (hoisted out of the hot forward path).

    weight: (N, K) in PyTorch nn.Linear convention.
    Returns:
      w_t: (K_pad, N) transposed weight, K zero-padded to a multiple of tk
           (N is intentionally NOT padded -- keeps the dominant HBM stream
            at its real size).
      b2:  (1, N) bias row.
    """
    n, k = weight.shape
    k_pad = _round_up(k, tk)
    w_t = jnp.zeros((k_pad, n), weight.dtype).at[:k, :].set(weight.T)
    b2 = bias.reshape(1, n)
    return w_t, b2


def _linear_kernel(x_ref, w_ref, b_ref, o_ref, acc_ref, *, k_total, tk, ragged):
    k = pl.program_id(1)                 # reduction axis (last grid axis)
    nk = pl.num_programs(1)

    @pl.when(k == 0)
    def _():
        acc_ref[...] = jnp.zeros_like(acc_ref)

    # W is VMEM-resident (full (K_pad, N) block); slice this step's K chunk.
    kk = pl.multiple_of(k * tk, _LANE)
    w = w_ref[pl.ds(kk, tk), :]

    if not ragged:
        acc_ref[...] += jnp.dot(x_ref[...], w,
                                preferred_element_type=jnp.float32)
    else:
        is_last = k == nk - 1

        @pl.when(jnp.logical_not(is_last))
        def _():
            acc_ref[...] += jnp.dot(x_ref[...], w,
                                    preferred_element_type=jnp.float32)

        @pl.when(is_last)
        def _():
            # Final K tile overhangs the real K extent: its out-of-bounds
            # lanes hold stale VMEM data.  Zero them (padded W rows are also
            # zero, but 0 * NaN from stale memory would still poison the sum).
            x = x_ref[...]
            col = jax.lax.broadcasted_iota(jnp.int32, x.shape, dimension=1)
            x = jnp.where(col < (k_total - k * tk), x, 0.0)
            acc_ref[...] += jnp.dot(x, w, preferred_element_type=jnp.float32)

    @pl.when(k == nk - 1)
    def _():
        o_ref[...] = (acc_ref[...] + b_ref[...]).astype(o_ref.dtype)


def svm_forward(x, w_t, b2, *, num_classes, tk):
    """Equivalent of nn.Linear(input_dim, num_classes) on flattened x.

    x:   (B, C, H, W) float32
    w_t: (K_pad, N) pre-transposed / K-padded weight (prepare_linear_params)
    b2:  (1, N) bias
    returns (B, num_classes) float32
    """
    b_sz = x.shape[0]
    x_flat = x.reshape(b_sz, -1)          # row-major flatten == torch .view
    k_total = x_flat.shape[1]
    k_pad, n = w_t.shape
    nk = pl.cdiv(k_total, tk)
    assert k_pad == nk * tk, "w_t must be prepared with the same tk"
    assert n == num_classes

    # Batch tiling: full-sublane tiles when B divides cleanly, otherwise one
    # full-array block (legal because it equals the full array dim).
    tb = b_sz
    if b_sz % 8 == 0:
        for cand in (512, 256, 128, 64, 32, 16, 8):
            if b_sz % cand == 0:
                tb = cand
                break
    nb = b_sz // tb

    ragged = (k_total % tk) != 0

    # Scoped-VMEM budget: resident W (x2 for default buffering) +
    # double-buffered x tile + out + acc + bias, 2x headroom, capped at
    # 48 MiB (well under v7x's 64 MiB physical VMEM).
    need = 4 * (2 * k_pad * n + 2 * tb * tk + 3 * tb * n + n)
    vmem_limit = min(max(2 * need, 16 * 1024 * 1024), 48 * 1024 * 1024)

    kernel = functools.partial(_linear_kernel, k_total=k_total, tk=tk,
                               ragged=ragged)

    cost = pl.CostEstimate(
        flops=2 * b_sz * k_total * n,
        transcendentals=0,
        bytes_accessed=4 * (b_sz * k_total + k_pad * n + b_sz * n + n),
    )

    out = pl.pallas_call(
        kernel,
        out_shape=jax.ShapeDtypeStruct((b_sz, n), x.dtype),
        grid_spec=pltpu.PrefetchScalarGridSpec(
            num_scalar_prefetch=0,
            grid=(nb, nk),                                     # K reduction last
            in_specs=[
                pl.BlockSpec((tb, tk), lambda b, k: (b, k)),      # x tile
                pl.BlockSpec((k_pad, n), lambda b, k: (0, 0)),    # W^T resident
                pl.BlockSpec((1, n), lambda b, k: (0, 0)),        # bias resident
            ],
            out_specs=pl.BlockSpec((tb, n), lambda b, k: (b, 0)),
            scratch_shapes=[pltpu.VMEM((tb, n), jnp.float32)],
        ),
        compiler_params=pltpu.CompilerParams(
            dimension_semantics=("parallel", "arbitrary"),
            vmem_limit_bytes=vmem_limit,
        ),
        cost_estimate=cost,
    )(x_flat, w_t, b2)

    return out


if __name__ == "__main__":
    # Small stand-in for the real 256x256x3 input (input_dim = 196608).
    B, C, H, W = 2, 3, 16, 16
    input_dim = C * H * W          # 768
    num_classes = NUM_CLASSES      # 14

    key = jax.random.PRNGKey(0)
    kx, kw, kb = jax.random.split(key, 3)

    x = jax.random.normal(kx, (B, C, H, W), dtype=jnp.float32)
    # Deterministic init mimicking nn.Linear's uniform(-1/sqrt(in), 1/sqrt(in)).
    bound = 1.0 / (input_dim ** 0.5)
    weight = jax.random.uniform(kw, (num_classes, input_dim),
                                minval=-bound, maxval=bound, dtype=jnp.float32)
    bias = jax.random.uniform(kb, (num_classes,),
                              minval=-bound, maxval=bound, dtype=jnp.float32)

    tk = choose_k_tile(input_dim, B)             # 768 here; 8192 at full size
    w_t, b2 = prepare_linear_params(weight, bias, tk=tk)   # one-time prep

    out = svm_forward(x, w_t, b2, num_classes=num_classes, tk=tk)
    out = jax.block_until_ready(out)

    # Reference check against plain JAX.
    ref = x.reshape(B, -1) @ weight.T + bias
    assert out.shape == (B, num_classes)
    assert jnp.allclose(out, ref, atol=1e-4, rtol=1e-4)

    print("KERNEL_OK")
</pallas_src>

<mosaic_0001>
module attributes {stable_mosaic.version = 11 : i64} {
  func.func @_linear_kernel(%arg0: i32, %arg1: i32, %arg2: memref<2x768xf32, #tpu.memory_space<vmem>>, %arg3: memref<768x14xf32, #tpu.memory_space<vmem>>, %arg4: memref<1x14xf32, #tpu.memory_space<vmem>>, %arg5: memref<2x14xf32, #tpu.memory_space<vmem>>, %arg6: memref<2x14xf32, #tpu.memory_space<vmem>>) attributes {dimension_semantics = [#tpu.dimension_semantics<parallel>, #tpu.dimension_semantics<arbitrary>], iteration_bounds = array<i64: 1, 1>, scalar_prefetch = 0 : i64, scratch_operands = 1 : i64, tpu.core_type = #tpu.core_type<tc>, window_params = [{transform_indices = @transform_0, window_bounds = array<i64: 2, 768>}, {pipeline_mode = #tpu.pipeline_mode<synchronous>, transform_indices = @transform_1, window_bounds = array<i64: 768, 14>}, {pipeline_mode = #tpu.pipeline_mode<synchronous>, transform_indices = @transform_2, window_bounds = array<i64: 1, 14>}, {transform_indices = @transform_3, window_bounds = array<i64: 2, 14>}]} {
    %c0_i32 = arith.constant 0 : i32
    %0 = arith.cmpi eq, %arg1, %c0_i32 : i32
    %1 = arith.extui %0 : i1 to i32
    %c0_i32_0 = arith.constant 0 : i32
    %2 = arith.cmpi ne, %1, %c0_i32_0 : i32
    scf.if %2 {
      %cst_9 = arith.constant 0.000000e+00 : f32
      %15 = vector.broadcast %cst_9 : f32 to vector<2x14xf32>
      %c0_10 = arith.constant 0 : index
      %c0_11 = arith.constant 0 : index
      %16 = vector.load %arg6[%c0_10, %c0_11] : memref<2x14xf32, #tpu.memory_space<vmem>>, vector<2x14xf32>
      tpu.vector_store %arg6[%c0_10, %c0_11], %15 {strides = array<i32>} : memref<2x14xf32, #tpu.memory_space<vmem>>, vector<2x14xf32>,
    } else {
    }
    %c768_i32 = arith.constant 768 : i32
    %3 = arith.muli %arg1, %c768_i32 : i32
    %4 = tpu.assume_multiple %3, 128 : i32
    %5 = arith.index_cast %4 : i32 to index
    %c0 = arith.constant 0 : index
    %6 = vector.load %arg3[%5, %c0] : memref<768x14xf32, #tpu.memory_space<vmem>>, vector<768x14xf32>
    %c0_1 = arith.constant 0 : index
    %c0_2 = arith.constant 0 : index
    %7 = vector.load %arg6[%c0_1, %c0_2] : memref<2x14xf32, #tpu.memory_space<vmem>>, vector<2x14xf32>
    %c0_3 = arith.constant 0 : index
    %c0_4 = arith.constant 0 : index
    %8 = vector.load %arg2[%c0_3, %c0_4] : memref<2x768xf32, #tpu.memory_space<vmem>>, vector<2x768xf32>
    %cst = arith.constant dense<0.000000e+00> : vector<2x14xf32>
    %9 = tpu.matmul %8, %6, %cst {dimension_numbers = #tpu.dot_dimension_numbers<[1], [0], [0], [1], [0, 0, 1, 1], [], []>} : vector<2x768xf32>, vector<768x14xf32>, vector<2x14xf32> -> vector<2x14xf32>
    %10 = arith.addf %7, %9 : vector<2x14xf32>
    %c0_5 = arith.constant 0 : index
    %c0_6 = arith.constant 0 : index
    %11 = vector.load %arg6[%c0_5, %c0_6] : memref<2x14xf32, #tpu.memory_space<vmem>>, vector<2x14xf32>
    tpu.vector_store %arg6[%c0_5, %c0_6], %10 {strides = array<i32>} : memref<2x14xf32, #tpu.memory_space<vmem>>, vector<2x14xf32>,
    %c0_i32_7 = arith.constant 0 : i32
    %12 = arith.cmpi eq, %arg1, %c0_i32_7 : i32
    %13 = arith.extui %12 : i1 to i32
    %c0_i32_8 = arith.constant 0 : i32
    %14 = arith.cmpi ne, %13, %c0_i32_8 : i32
    scf.if %14 {
      %c0_9 = arith.constant 0 : index
      %c0_10 = arith.constant 0 : index
      %15 = vector.load %arg6[%c0_9, %c0_10] : memref<2x14xf32, #tpu.memory_space<vmem>>, vector<2x14xf32>
      %c0_11 = arith.constant 0 : index
      %c0_12 = arith.constant 0 : index
      %16 = vector.load %arg4[%c0_11, %c0_12] : memref<1x14xf32, #tpu.memory_space<vmem>>, vector<1x14xf32>
      %17 = vector.broadcast %16 : vector<1x14xf32> to vector<2x14xf32>
      %18 = arith.addf %15, %17 : vector<2x14xf32>
      %c0_13 = arith.constant 0 : index
      %c0_14 = arith.constant 0 : index
      %19 = vector.load %arg5[%c0_13, %c0_14] : memref<2x14xf32, #tpu.memory_space<vmem>>, vector<2x14xf32>
      tpu.vector_store %arg5[%c0_13, %c0_14], %18 {strides = array<i32>} : memref<2x14xf32, #tpu.memory_space<vmem>>, vector<2x14xf32>,
    } else {
    }
    return
  }
  func.func @transform_0(%arg0: i32, %arg1: i32) -> (i32, i32) {
    %c0_i32 = arith.constant 0 : i32
    return %arg0, %arg1 : i32, i32
  }
  func.func @transform_1(%arg0: i32, %arg1: i32) -> (i32, i32) {
    %c0_i32 = arith.constant 0 : i32
    %c0_i32_0 = arith.constant 0 : i32
    %c0_i32_1 = arith.constant 0 : i32
    return %c0_i32, %c0_i32_0 : i32, i32
  }
  func.func @transform_2(%arg0: i32, %arg1: i32) -> (i32, i32) {
    %c0_i32 = arith.constant 0 : i32
    %c0_i32_0 = arith.constant 0 : i32
    %c0_i32_1 = arith.constant 0 : i32
    return %c0_i32, %c0_i32_0 : i32, i32
  }
  func.func @transform_3(%arg0: i32, %arg1: i32) -> (i32, i32) {
    %c0_i32 = arith.constant 0 : i32
    %c0_i32_0 = arith.constant 0 : i32
    return %arg0, %c0_i32 : i32, i32
  }
}

</mosaic_0001>

<llo_original>
// kernel: tpu_custom_call.1
$region0: #{tpu_custom_call.1}
  #allocation0 [shape = 'u32[]', space=smem, size = 0x4, offset = 0x4, fixed_abs, tag = 'smem constant byte address 0x4 - core index']
  #allocation1 [shape = 'u32[72,128]{1,0:T(1,128)}', space=vmem, size = 0x9000, scoped, tag = 'internal scratch']
  #allocation2 [shape = 'f32[2,14]{1,0:T(2,128)}', space=vmem, size = 0x400, scoped, tag = 'scratch operand']
  %s0 = inlined_call_operand.vmem [shape: f32[2,768], index: 0, kind: input, shape index: {}]
  %s1 = inlined_call_operand.vmem [shape: f32[768,14], index: 1, kind: input, shape index: {}]
  %s2 = inlined_call_operand.vmem [shape: f32[1,14], index: 2, kind: input, shape index: {}]
  %s3 = inlined_call_operand.hbm [shape: f32[2,14], index: 3, kind: output, shape index: {}]
  %s4 = sld [smem:[#allocation0]]
  $region30: #{tpu_custom_call.1} parent=0
    _
  %s6 = ssub.s32 1, %s4
  %s7 = scalar_select 0, %s6, %s4
  $region1: #{tpu_custom_call.1} parent=0
    #allocation3 [shape = 'u8[1024]{0}', space=vmem, size = 0x400, scoped, tag = 'output window, operand 0, single buffered']
    #allocation4 [shape = 's32[1]{0}', space=sflag, size = 0x4, scoped, tag = 'scoped memory for tpu_custom_call.1']
    %8 = vsyncpa [#allocation4], 0
    // Predicated region
    $region2: #{tpu_custom_call.1} parent=1 // pred_check
      _
    $region3: #{tpu_custom_call.1} parent=1 // pred_check_branch
      %10 = sbr.rel (0) target = $region5
    $region4: #{tpu_custom_call.1} parent=1 // pred_region
      _
    $region5: #{tpu_custom_call.1} parent=1 // pred_fallthru
      _
    // Predicated region
    $region6: #{tpu_custom_call.1} parent=1 // pred_check
      _
    $region7: #{tpu_custom_call.1} parent=1 // pred_check_branch
      %12 = sbr.rel (0) target = $region9
    $region8: #{tpu_custom_call.1} parent=1 // pred_region
      _
    $region9: #{tpu_custom_call.1} parent=1 // pred_fallthru
      _
    // Predicated region
    $region10: #{tpu_custom_call.1} parent=1 // pred_check
      _
    $region11: #{tpu_custom_call.1} parent=1 // pred_check_branch
      %14 = sbr.rel (0) target = $region13
    $region12: #{tpu_custom_call.1} parent=1 // pred_region
      _
    $region13: #{tpu_custom_call.1} parent=1 // pred_fallthru
      _
    %p15 = scmp.eq.s32.totalorder 0, 0
    // Predicated region
    $region14: #{tpu_custom_call.1} parent=1 // pred_check
      %p16 = pneg %p15
    $region15: #{tpu_custom_call.1} parent=1 // pred_check_branch
      %18 = sbr.rel (%p16) target = $region17
    $region16: #{tpu_custom_call.1} parent=1 // pred_region
      %vm19 = vcmask 107520
      %20 = vst.msk [vmem:[#allocation2] sm:$0x3] %vm19, 0.0
    $region17: #{tpu_custom_call.1} parent=1 // pred_fallthru
      _
    %s21 = smul.u32 0, 768
    %s22 = scalar_lea.vmem %s1, %s21
    %v23 = vld [vmem:[%s22] sm:$0xff]
    %v24 = vld [vmem:[%s22 + $0x8] sm:$0xff]
    %v25 = vld [vmem:[%s22 + $0x10] sm:$0xff]
    %v26 = vld [vmem:[%s22 + $0x18] sm:$0xff]
    %v27 = vld [vmem:[%s22 + $0x20] sm:$0xff]
    %v28 = vld [vmem:[%s22 + $0x28] sm:$0xff]
    %v29 = vld [vmem:[%s22 + $0x30] sm:$0xff]
    %v30 = vld [vmem:[%s22 + $0x38] sm:$0xff]
    %v31 = vld [vmem:[%s22 + $0x40] sm:$0xff]
    %v32 = vld [vmem:[%s22 + $0x48] sm:$0xff]
    %v33 = vld [vmem:[%s22 + $0x50] sm:$0xff]
    %v34 = vld [vmem:[%s22 + $0x58] sm:$0xff]
    %v35 = vld [vmem:[%s22 + $0x60] sm:$0xff]
    %v36 = vld [vmem:[%s22 + $0x68] sm:$0xff]
    %v37 = vld [vmem:[%s22 + $0x70] sm:$0xff]
    %v38 = vld [vmem:[%s22 + $0x78] sm:$0xff]
    %v39 = vld [vmem:[%s22 + $0x80] sm:$0xff]
    %v40 = vld [vmem:[%s22 + $0x88] sm:$0xff]
    %v41 = vld [vmem:[%s22 + $0x90] sm:$0xff]
    %v42 = vld [vmem:[%s22 + $0x98] sm:$0xff]
    %v43 = vld [vmem:[%s22 + $0xa0] sm:$0xff]
    %v44 = vld [vmem:[%s22 + $0xa8] sm:$0xff]
    %v45 = vld [vmem:[%s22 + $0xb0] sm:$0xff]
    %v46 = vld [vmem:[%s22 + $0xb8] sm:$0xff]
    %v47 = vld [vmem:[%s22 + $0xc0] sm:$0xff]
    %v48 = vld [vmem:[%s22 + $0xc8] sm:$0xff]
    %v49 = vld [vmem:[%s22 + $0xd0] sm:$0xff]
    %v50 = vld [vmem:[%s22 + $0xd8] sm:$0xff]
    %v51 = vld [vmem:[%s22 + $0xe0] sm:$0xff]
    %v52 = vld [vmem:[%s22 + $0xe8] sm:$0xff]
    %v53 = vld [vmem:[%s22 + $0xf0] sm:$0xff]
    %v54 = vld [vmem:[%s22 + $0xf8] sm:$0xff]
    %v55 = vld [vmem:[%s22 + $0x100] sm:$0xff]
    %v56 = vld [vmem:[%s22 + $0x108] sm:$0xff]
    %v57 = vld [vmem:[%s22 + $0x110] sm:$0xff]
    %v58 = vld [vmem:[%s22 + $0x118] sm:$0xff]
    %v59 = vld [vmem:[%s22 + $0x120] sm:$0xff]
    %v60 = vld [vmem:[%s22 + $0x128] sm:$0xff]
    %v61 = vld [vmem:[%s22 + $0x130] sm:$0xff]
    %v62 = vld [vmem:[%s22 + $0x138] sm:$0xff]
    %v63 = vld [vmem:[%s22 + $0x140] sm:$0xff]
    %v64 = vld [vmem:[%s22 + $0x148] sm:$0xff]
    %v65 = vld [vmem:[%s22 + $0x150] sm:$0xff]
    %v66 = vld [vmem:[%s22 + $0x158] sm:$0xff]
    %v67 = vld [vmem:[%s22 + $0x160] sm:$0xff]
    %v68 = vld [vmem:[%s22 + $0x168] sm:$0xff]
    %v69 = vld [vmem:[%s22 + $0x170] sm:$0xff]
    %v70 = vld [vmem:[%s22 + $0x178] sm:$0xff]
    %v71 = vld [vmem:[%s22 + $0x180] sm:$0xff]
    %v72 = vld [vmem:[%s22 + $0x188] sm:$0xff]
    %v73 = vld [vmem:[%s22 + $0x190] sm:$0xff]
    %v74 = vld [vmem:[%s22 + $0x198] sm:$0xff]
    %v75 = vld [vmem:[%s22 + $0x1a0] sm:$0xff]
    %v76 = vld [vmem:[%s22 + $0x1a8] sm:$0xff]
    %v77 = vld [vmem:[%s22 + $0x1b0] sm:$0xff]
    %v78 = vld [vmem:[%s22 + $0x1b8] sm:$0xff]
    %v79 = vld [vmem:[%s22 + $0x1c0] sm:$0xff]
    %v80 = vld [vmem:[%s22 + $0x1c8] sm:$0xff]
    %v81 = vld [vmem:[%s22 + $0x1d0] sm:$0xff]
    %v82 = vld [vmem:[%s22 + $0x1d8] sm:$0xff]
    %v83 = vld [vmem:[%s22 + $0x1e0] sm:$0xff]
    %v84 = vld [vmem:[%s22 + $0x1e8] sm:$0xff]
    %v85 = vld [vmem:[%s22 + $0x1f0] sm:$0xff]
    %v86 = vld [vmem:[%s22 + $0x1f8] sm:$0xff]
    %v87 = vld [vmem:[%s22 + $0x200] sm:$0xff]
    %v88 = vld [vmem:[%s22 + $0x208] sm:$0xff]
    %v89 = vld [vmem:[%s22 + $0x210] sm:$0xff]
    %v90 = vld [vmem:[%s22 + $0x218] sm:$0xff]
    %v91 = vld [vmem:[%s22 + $0x220] sm:$0xff]
    %v92 = vld [vmem:[%s22 + $0x228] sm:$0xff]
    %v93 = vld [vmem:[%s22 + $0x230] sm:$0xff]
    %v94 = vld [vmem:[%s22 + $0x238] sm:$0xff]
    %v95 = vld [vmem:[%s22 + $0x240] sm:$0xff]
    %v96 = vld [vmem:[%s22 + $0x248] sm:$0xff]
    %v97 = vld [vmem:[%s22 + $0x250] sm:$0xff]
    %v98 = vld [vmem:[%s22 + $0x258] sm:$0xff]
    %v99 = vld [vmem:[%s22 + $0x260] sm:$0xff]
    %v100 = vld [vmem:[%s22 + $0x268] sm:$0xff]
    %v101 = vld [vmem:[%s22 + $0x270] sm:$0xff]
    %v102 = vld [vmem:[%s22 + $0x278] sm:$0xff]
    %v103 = vld [vmem:[%s22 + $0x280] sm:$0xff]
    %v104 = vld [vmem:[%s22 + $0x288] sm:$0xff]
    %v105 = vld [vmem:[%s22 + $0x290] sm:$0xff]
    %v106 = vld [vmem:[%s22 + $0x298] sm:$0xff]
    %v107 = vld [vmem:[%s22 + $0x2a0] sm:$0xff]
    %v108 = vld [vmem:[%s22 + $0x2a8] sm:$0xff]
    %v109 = vld [vmem:[%s22 + $0x2b0] sm:$0xff]
    %v110 = vld [vmem:[%s22 + $0x2b8] sm:$0xff]
    %v111 = vld [vmem:[%s22 + $0x2c0] sm:$0xff]
    %v112 = vld [vmem:[%s22 + $0x2c8] sm:$0xff]
    %v113 = vld [vmem:[%s22 + $0x2d0] sm:$0xff]
    %v114 = vld [vmem:[%s22 + $0x2d8] sm:$0xff]
    %v115 = vld [vmem:[%s22 + $0x2e0] sm:$0xff]
    %v116 = vld [vmem:[%s22 + $0x2e8] sm:$0xff]
    %v117 = vld [vmem:[%s22 + $0x2f0] sm:$0xff]
    %v118 = vld [vmem:[%s22 + $0x2f8] sm:$0xff]
    %v119 = vld [vmem:[#allocation2] sm:$0x3]
    %v120 = vld [vmem:[%s0] sm:$0xff]
    %v121 = vld [vmem:[%s0 + $0x8] sm:$0xf]
    %124 = vst [vmem:[#allocation1] ss:$4 sm:$0xff] %v120
    %s125 = scalar_lea.vmem [#allocation1], 32
    %126 = vst [vmem:[%s125] ss:$4 sm:$0xff] %v121
    %v127 = vld.sshfl [vmem:[#allocation1] sm:$0xff pattern:$0x73625140]
    %v128 = vld.sshfl [vmem:[#allocation1 + $0x8] sm:$0xff pattern:$0x73625140]
    %v129 = vld.sshfl [vmem:[#allocation1 + $0x10] sm:$0xff pattern:$0x73625140]
    %v130 = vld.sshfl [vmem:[#allocation1 + $0x18] sm:$0xff pattern:$0x73625140]
    %v131 = vld.sshfl [vmem:[#allocation1 + $0x20] sm:$0xff pattern:$0x73625140]
    %v132 = vld.sshfl [vmem:[#allocation1 + $0x28] sm:$0xff pattern:$0x73625140]
    %139 = vmatpush.msra.mxu0 %v38
    %140 = vmatpush.msra.mxu0 %v37
    %141 = vmatpush.msra.mxu0 %v36
    %142 = vmatpush.msra.mxu0 %v35
    %143 = vmatpush.msra.mxu0 %v34
    %144 = vmatpush.msra.mxu0 %v33
    %145 = vmatpush.msra.mxu0 %v32
    %146 = vmatpush.msra.mxu0 %v31
    %147 = vmatpush.msra.mxu0 %v30
    %148 = vmatpush.msra.mxu0 %v29
    %149 = vmatpush.msra.mxu0 %v28
    %150 = vmatpush.msra.mxu0 %v27
    %151 = vmatpush.msra.mxu0 %v26
    %152 = vmatpush.msra.mxu0 %v25
    %153 = vmatpush.msra.mxu0 %v24
    %154 = vmatpush.msra.mxu0 %v23
    %155 = vmatmul.f32.gmra.mxu0 %v127
    %v156 = vpop.f32.mrf.mxu0
    %v157 = vadd.f32 0.0, %v156
    %158 = vdwg.mxu0
    %159 = vmatpush.msra.mxu0 %v54
    %160 = vmatpush.msra.mxu0 %v53
    %161 = vmatpush.msra.mxu0 %v52
    %162 = vmatpush.msra.mxu0 %v51
    %163 = vmatpush.msra.mxu0 %v50
    %164 = vmatpush.msra.mxu0 %v49
    %165 = vmatpush.msra.mxu0 %v48
    %166 = vmatpush.msra.mxu0 %v47
    %167 = vmatpush.msra.mxu0 %v46
    %168 = vmatpush.msra.mxu0 %v45
    %169 = vmatpush.msra.mxu0 %v44
    %170 = vmatpush.msra.mxu0 %v43
    %171 = vmatpush.msra.mxu0 %v42
    %172 = vmatpush.msra.mxu0 %v41
    %173 = vmatpush.msra.mxu0 %v40
    %174 = vmatpush.msra.mxu0 %v39
    %175 = vmatmul.f32.gmra.mxu0 %v128
    %v176 = vpop.f32.mrf.mxu0
    %v177 = vadd.f32 %v157, %v176
    %178 = vdwg.mxu0
    %179 = vmatpush.msra.mxu0 %v70
    %180 = vmatpush.msra.mxu0 %v69
    %181 = vmatpush.msra.mxu0 %v68
    %182 = vmatpush.msra.mxu0 %v67
    %183 = vmatpush.msra.mxu0 %v66
    %184 = vmatpush.msra.mxu0 %v65
    %185 = vmatpush.msra.mxu0 %v64
    %186 = vmatpush.msra.mxu0 %v63
    %187 = vmatpush.msra.mxu0 %v62
    %188 = vmatpush.msra.mxu0 %v61
    %189 = vmatpush.msra.mxu0 %v60
    %190 = vmatpush.msra.mxu0 %v59
    %191 = vmatpush.msra.mxu0 %v58
    %192 = vmatpush.msra.mxu0 %v57
    %193 = vmatpush.msra.mxu0 %v56
    %194 = vmatpush.msra.mxu0 %v55
    %195 = vmatmul.f32.gmra.mxu0 %v129
    %v196 = vpop.f32.mrf.mxu0
    %v197 = vadd.f32 %v177, %v196
    %198 = vdwg.mxu0
    %199 = vmatpush.msra.mxu0 %v86
    %200 = vmatpush.msra.mxu0 %v85
    %201 = vmatpush.msra.mxu0 %v84
    %202 = vmatpush.msra.mxu0 %v83
    %203 = vmatpush.msra.mxu0 %v82
    %204 = vmatpush.msra.mxu0 %v81
    %205 = vmatpush.msra.mxu0 %v80
    %206 = vmatpush.msra.mxu0 %v79
    %207 = vmatpush.msra.mxu0 %v78
    %208 = vmatpush.msra.mxu0 %v77
    %209 = vmatpush.msra.mxu0 %v76
    %210 = vmatpush.msra.mxu0 %v75
    %211 = vmatpush.msra.mxu0 %v74
    %212 = vmatpush.msra.mxu0 %v73
    %213 = vmatpush.msra.mxu0 %v72
    %214 = vmatpush.msra.mxu0 %v71
    %215 = vmatmul.f32.gmra.mxu0 %v130
    %v216 = vpop.f32.mrf.mxu0
    %v217 = vadd.f32 %v197, %v216
    %218 = vdwg.mxu0
    %219 = vmatpush.msra.mxu0 %v102
    %220 = vmatpush.msra.mxu0 %v101
    %221 = vmatpush.msra.mxu0 %v100
    %222 = vmatpush.msra.mxu0 %v99
    %223 = vmatpush.msra.mxu0 %v98
    %224 = vmatpush.msra.mxu0 %v97
    %225 = vmatpush.msra.mxu0 %v96
    %226 = vmatpush.msra.mxu0 %v95
    %227 = vmatpush.msra.mxu0 %v94
    %228 = vmatpush.msra.mxu0 %v93
    %229 = vmatpush.msra.mxu0 %v92
    %230 = vmatpush.msra.mxu0 %v91
    %231 = vmatpush.msra.mxu0 %v90
    %232 = vmatpush.msra.mxu0 %v89
    %233 = vmatpush.msra.mxu0 %v88
    %234 = vmatpush.msra.mxu0 %v87
    %235 = vmatmul.f32.gmra.mxu0 %v131
    %v236 = vpop.f32.mrf.mxu0
    %v237 = vadd.f32 %v217, %v236
    %238 = vdwg.mxu0
    %239 = vmatpush.msra.mxu0 %v118
    %240 = vmatpush.msra.mxu0 %v117
    %241 = vmatpush.msra.mxu0 %v116
    %242 = vmatpush.msra.mxu0 %v115
    %243 = vmatpush.msra.mxu0 %v114
    %244 = vmatpush.msra.mxu0 %v113
    %245 = vmatpush.msra.mxu0 %v112
    %246 = vmatpush.msra.mxu0 %v111
    %247 = vmatpush.msra.mxu0 %v110
    %248 = vmatpush.msra.mxu0 %v109
    %249 = vmatpush.msra.mxu0 %v108
    %250 = vmatpush.msra.mxu0 %v107
    %251 = vmatpush.msra.mxu0 %v106
    %252 = vmatpush.msra.mxu0 %v105
    %253 = vmatpush.msra.mxu0 %v104
    %254 = vmatpush.msra.mxu0 %v103
    %255 = vmatmul.f32.gmra.mxu0 %v132
    %v256 = vpop.f32.mrf.mxu0
    %v257 = vadd.f32 %v237, %v256
    %258 = vdwg.mxu0
    %v259 = vadd.f32 %v119, %v257
    %vm260 = vcmask 107520
    %261 = vst.msk [vmem:[#allocation2] sm:$0x3] %vm260, %v259
    // Predicated region
    $region18: #{tpu_custom_call.1} parent=1 // pred_check
      %p262 = pneg %p15
    $region19: #{tpu_custom_call.1} parent=1 // pred_check_branch
      %264 = sbr.rel (%p262) target = $region21
    $region20: #{tpu_custom_call.1} parent=1 // pred_region
      %v265 = vld [vmem:[#allocation2] sm:$0x3]
      %v266 = vld [vmem:[%s2] sm:$0x1]
      %v268 = vperm.slane %v266, 0
      %v270 = vadd.f32 %v265, %v268
      %271 = vst.msk [vmem:[#allocation3] sm:$0x3] %vm260, %v270
    $region21: #{tpu_custom_call.1} parent=1 // pred_fallthru
      _
    // Predicated region
    $region22: #{tpu_custom_call.1} parent=1 // pred_check
      _
    $region23: #{tpu_custom_call.1} parent=1 // pred_check_branch
      %273 = sbr.rel (0) target = $region25
    $region24: #{tpu_custom_call.1} parent=1 // pred_region
      %275 = vsyncadd [#allocation4], 0
      %s277 = sshll.u32 [#allocation3], 4
      %s278 = int_to_ptr.vmem [resolvable:$true] %s277
      %s279 = sshll.u32 %s3, 4
      %s280 = int_to_ptr.hbm [resolvable:$true] %s279
      %282 = dma.vmem_to_hbm [thread:$0]  %s278, 32, %s280, [#allocation4]
    $region25: #{tpu_custom_call.1} parent=1 // pred_fallthru
      _
    // Predicated region
    $region26: #{tpu_custom_call.1} parent=1 // pred_check
      _
    $region27: #{tpu_custom_call.1} parent=1 // pred_check_branch
      %284 = sbr.rel (0) target = $region29
    $region28: #{tpu_custom_call.1} parent=1 // pred_region
      %286 = dma.done [#allocation4], 32
    $region29: #{tpu_custom_call.1} parent=1 // pred_fallthru
      _
    %287 = vsyncpa [#allocation4], 1

</llo_original>
